<compile_context>
chip_gen: v6e
topology: v6e:2x2x1
jax: 0.10.0
libtpu: 0.0.40
codegen_flags: <defaults>
</compile_context>

<pallas_src>
import math

import jax
import jax.numpy as jnp
from jax.experimental import pallas as pl
from jax.experimental.pallas import tpu as pltpu


def _round_up(x: int, m: int) -> int:
    return ((x + m - 1) // m) * m


def _vmem_bytes_estimate(tile_m: int, d_in: int, hidden: int, x_bytes: int) -> int:
    """Rough per-grid-step VMEM footprint (2x buffers on pipelined operands)."""
    x_stream = 2 * tile_m * d_in * x_bytes        # streamed x tile (double buffered)
    w1_res = 2 * d_in * hidden * 2                # bf16 weights (constant block, 2 bufs)
    params_res = 2 * 8 * hidden * 4               # (4,H) packed params, 8-sublane padded
    out_tile = 2 * 8 * tile_m * 4                 # (1,tile_m) output, 8-sublane padded
    interm = 3 * tile_m * hidden * 4              # h + f32 temporaries
    return x_stream + w1_res + params_res + out_tile + interm


def pollute_linear_kernel(x_ref, w1_ref, params_ref, b2_ref, o_ref):
    x = x_ref[...]
    if x.dtype != jnp.bfloat16:
        # Fallback for f32 producers; production should deliver bf16 x in HBM.
        x = x.astype(jnp.bfloat16)

    b1 = params_ref[0:1, :]
    gamma = params_ref[1:2, :]
    beta = params_ref[2:3, :]
    w2 = params_ref[3:4, :]

    # dense: [TILE_M, D_in] @ [D_in, H] (bf16 operands, f32 accumulation on MXU)
    h = jnp.dot(x, w1_ref[...], preferred_element_type=jnp.float32) + b1

    # GELU (erf form), f32 on VPU/EUP.
    h = h * 0.5 * (1.0 + jax.lax.erf(h * (1.0 / math.sqrt(2.0))))

    # LayerNorm over last dim, eps=1e-12, fused single-pass E[x^2]-E[x]^2
    # (clamped at 0 -- keeps garbage rows of a partial tail tile finite).
    mean = jnp.mean(h, axis=-1, keepdims=True)
    mean_sq = jnp.mean(h * h, axis=-1, keepdims=True)
    var = jnp.maximum(mean_sq - mean * mean, 0.0)
    h = (h - mean) * jax.lax.rsqrt(var + 1e-12)
    h = h * gamma + beta

    # decoder (H -> 1): VPU multiply + lane reduction, stored lane-dense (1, TILE_M).
    dec = jnp.sum(h * w2, axis=-1) + b2_ref[0, 0]
    o_ref[...] = dec.reshape(1, -1).astype(o_ref.dtype)


def pollute_linear(x, w1, b1, gamma, beta, w2, b2, *, tile_m=512,
                   vmem_budget_bytes=28 * 1024 * 1024):
    """x: [..., D_in] -> [..., 1].

    Weight layouts: w1 [D_in, H] (transposed vs. PyTorch), b1/gamma/beta [1, H],
    w2 [1, H] (PyTorch decoder layout), b2 [1, 1].

    x is streamed in its HBM dtype: deliver bf16 activations from the producer
    to halve the dominant HBM stream.  (Casting here would add a full
    read+write XLA pass over x and is a net loss, so it is not done.)
    """
    lead_shape = x.shape[:-1]
    d_in = x.shape[-1]
    hidden = w1.shape[1]
    rows = math.prod(lead_shape) if lead_shape else 1

    x2d = x.reshape(rows, d_in)                     # view: no pad, no dtype cast
    x_bytes = x2d.dtype.itemsize

    # Row tile: multiple of 128 (MXU-friendly M, lane-dense output).
    tile_m = min(tile_m, _round_up(rows, 128))
    # Megacore: ensure >=2 row tiles when rows allow it so the "parallel" grid
    # axis gives both v7x TensorCores work.
    if rows > 128:
        tile_m = min(tile_m, _round_up(-(-rows // 2), 128))
    # VMEM-aware clamp (covers v7x 64 MiB VMEM / v5e 16 MiB scoped default).
    while tile_m > 128 and _vmem_bytes_estimate(tile_m, d_in, hidden, x_bytes) > vmem_budget_bytes:
        tile_m -= 128
    tile_m = max(128, (tile_m // 128) * 128)

    num_tiles = -(-rows // tile_m)                  # partial tail tile allowed

    # Pack per-channel epilogue params into one resident (4, H) block.
    params = jnp.concatenate(
        [b1.reshape(1, hidden), gamma.reshape(1, hidden),
         beta.reshape(1, hidden), w2.reshape(1, hidden)], axis=0
    ).astype(jnp.float32)

    w1_bf16 = w1.astype(jnp.bfloat16)               # bf16 MXU operand
    b2_smem = b2.reshape(1, 1).astype(jnp.float32)  # scalar bias via SMEM

    est_bytes = _vmem_bytes_estimate(tile_m, d_in, hidden, x_bytes)
    vmem_limit = int(min(max(est_bytes + (8 << 20), 16 << 20), 48 << 20))

    cost = pl.CostEstimate(
        flops=2 * rows * d_in * hidden + 12 * rows * hidden,
        transcendentals=rows * hidden + 2 * rows,
        bytes_accessed=(rows * d_in * x_bytes + d_in * hidden * 2
                        + 4 * hidden * 4 + 4 + rows * 4),
    )

    out = pl.pallas_call(
        pollute_linear_kernel,
        grid=(num_tiles,),
        out_shape=jax.ShapeDtypeStruct((1, rows), jnp.float32),
        in_specs=[
            pl.BlockSpec((tile_m, d_in), lambda i: (i, 0)),   # x: streamed per row tile
            pl.BlockSpec((d_in, hidden), lambda i: (0, 0)),   # w1: VMEM-resident
            pl.BlockSpec((4, hidden), lambda i: (0, 0)),      # packed b1/gamma/beta/w2
            pl.BlockSpec(memory_space=pltpu.SMEM),            # b2 scalar
        ],
        out_specs=pl.BlockSpec((1, tile_m), lambda i: (0, i)),
        compiler_params=pltpu.CompilerParams(
            dimension_semantics=("parallel",),
            vmem_limit_bytes=vmem_limit,
        ),
        cost_estimate=cost,
    )(x2d, w1_bf16, params, b2_smem)

    return out.reshape(*lead_shape, 1)


if __name__ == "__main__":
    # Small shapes consistent with the module (input_size, hidden_size scaled down).
    batch, seq = 2, 8
    input_size, hidden_size = 256, 128

    key = jax.random.PRNGKey(0)
    kx, kw1, kb1, kg, kbeta, kw2, kb2 = jax.random.split(key, 7)

    # Producer delivers activations as bf16 (halves the dominant HBM stream).
    x = jax.random.normal(kx, (batch, seq, input_size),
                          dtype=jnp.float32).astype(jnp.bfloat16)

    # dense: Linear(input_size -> hidden_size); stored as [D_in, H]
    w1 = jax.random.normal(kw1, (input_size, hidden_size), dtype=jnp.float32) * 0.02
    b1 = jax.random.normal(kb1, (1, hidden_size), dtype=jnp.float32) * 0.02

    # BertLayerNorm params
    gamma = jnp.ones((1, hidden_size), dtype=jnp.float32) \
        + 0.01 * jax.random.normal(kg, (1, hidden_size), dtype=jnp.float32)
    beta = 0.01 * jax.random.normal(kbeta, (1, hidden_size), dtype=jnp.float32)

    # decoder: Linear(hidden_size -> 1); weight in PyTorch layout [1, H]
    w2 = jax.random.normal(kw2, (1, hidden_size), dtype=jnp.float32) * 0.02
    b2 = jax.random.normal(kb2, (1, 1), dtype=jnp.float32) * 0.02

    out = pollute_linear(x, w1, b1, gamma, beta, w2, b2)
    jax.block_until_ready(out)

    # Pure-JAX reference (matches the kernel's bf16-operand / f32-accumulate dense).
    def ref(x):
        xb = x.astype(jnp.bfloat16)
        h = jnp.einsum("bsd,dh->bsh", xb, w1.astype(jnp.bfloat16),
                       preferred_element_type=jnp.float32) + b1[0]
        h = h * 0.5 * (1.0 + jax.lax.erf(h / math.sqrt(2.0)))
        mean = jnp.mean(h, axis=-1, keepdims=True)
        var = jnp.mean((h - mean) ** 2, axis=-1, keepdims=True)
        h = (h - mean) / jnp.sqrt(var + 1e-12)
        h = h * gamma[0] + beta[0]
        return jnp.einsum("bsh,oh->bso", h, w2) + b2[0]

    expected = ref(x)
    assert out.shape == (batch, seq, 1), out.shape
    assert jnp.allclose(out, expected, atol=2e-4, rtol=2e-4), \
        float(jnp.max(jnp.abs(out - expected)))

    print("KERNEL_OK")
</pallas_src>

<mosaic_0001>
module attributes {stable_mosaic.version = 11 : i64} {
  func.func @pollute_linear_kernel(%arg0: i32, %arg1: memref<128x256xbf16, #tpu.memory_space<vmem>>, %arg2: memref<256x128xbf16, #tpu.memory_space<vmem>>, %arg3: memref<4x128xf32, #tpu.memory_space<vmem>>, %arg4: memref<1x1xf32, #tpu.memory_space<smem>>, %arg5: memref<1x128xf32, #tpu.memory_space<vmem>>) attributes {dimension_semantics = [#tpu.dimension_semantics<parallel>], iteration_bounds = array<i64: 1>, scalar_prefetch = 0 : i64, scratch_operands = 0 : i64, tpu.core_type = #tpu.core_type<tc>, window_params = [{transform_indices = @transform_0, window_bounds = array<i64: 128, 256>}, {pipeline_mode = #tpu.pipeline_mode<synchronous>, transform_indices = @transform_1, window_bounds = array<i64: 256, 128>}, {pipeline_mode = #tpu.pipeline_mode<synchronous>, transform_indices = @transform_2, window_bounds = array<i64: 4, 128>}, {transform_indices = @transform_3, window_bounds = array<i64: 1, 1>}, {transform_indices = @transform_4, window_bounds = array<i64: 1, 128>}]} {
    %c0 = arith.constant 0 : index
    %c0_0 = arith.constant 0 : index
    %0 = vector.load %arg1[%c0, %c0_0] : memref<128x256xbf16, #tpu.memory_space<vmem>>, vector<128x256xbf16>
    %c0_1 = arith.constant 0 : index
    %c0_2 = arith.constant 0 : index
    %1 = vector.load %arg3[%c0_1, %c0_2] : memref<4x128xf32, #tpu.memory_space<vmem>>, vector<1x128xf32>
    %c1 = arith.constant 1 : index
    %c0_3 = arith.constant 0 : index
    %2 = vector.load %arg3[%c1, %c0_3] : memref<4x128xf32, #tpu.memory_space<vmem>>, vector<1x128xf32>
    %c2 = arith.constant 2 : index
    %c0_4 = arith.constant 0 : index
    %3 = vector.load %arg3[%c2, %c0_4] : memref<4x128xf32, #tpu.memory_space<vmem>>, vector<1x128xf32>
    %c3 = arith.constant 3 : index
    %c0_5 = arith.constant 0 : index
    %4 = vector.load %arg3[%c3, %c0_5] : memref<4x128xf32, #tpu.memory_space<vmem>>, vector<1x128xf32>
    %c0_6 = arith.constant 0 : index
    %c0_7 = arith.constant 0 : index
    %5 = vector.load %arg2[%c0_6, %c0_7] : memref<256x128xbf16, #tpu.memory_space<vmem>>, vector<256x128xbf16>
    %cst = arith.constant dense<0.000000e+00> : vector<128x128xf32>
    %6 = tpu.matmul %0, %5, %cst {dimension_numbers = #tpu.dot_dimension_numbers<[1], [0], [0], [1], [0, 0, 1, 1], [], []>} : vector<128x256xbf16>, vector<256x128xbf16>, vector<128x128xf32> -> vector<128x128xf32>
    %7 = vector.broadcast %1 : vector<1x128xf32> to vector<128x128xf32>
    %8 = arith.addf %6, %7 : vector<128x128xf32>
    %cst_8 = arith.constant 5.000000e-01 : f32
    %9 = vector.broadcast %cst_8 : f32 to vector<128x128xf32>
    %10 = arith.mulf %8, %9 : vector<128x128xf32>
    %cst_9 = arith.constant 0.707106769 : f32
    %11 = vector.broadcast %cst_9 : f32 to vector<128x128xf32>
    %12 = arith.mulf %8, %11 : vector<128x128xf32>
    %13 = math.erf %12 : vector<128x128xf32>
    %cst_10 = arith.constant 1.000000e+00 : f32
    %14 = vector.broadcast %cst_10 : f32 to vector<128x128xf32>
    %15 = arith.addf %14, %13 : vector<128x128xf32>
    %16 = arith.mulf %10, %15 : vector<128x128xf32>
    %cst_11 = arith.constant dense<0.000000e+00> : vector<128xf32>
    %17 = vector.multi_reduction <add>, %16, %cst_11 [1] : vector<128x128xf32> to vector<128xf32>
    %18 = vector.shape_cast %17 : vector<128xf32> to vector<128x1xf32>
    %cst_12 = arith.constant 1.280000e+02 : f32
    %19 = vector.broadcast %cst_12 : f32 to vector<128x1xf32>
    %20 = arith.divf %18, %19 : vector<128x1xf32>
    %21 = arith.mulf %16, %16 : vector<128x128xf32>
    %cst_13 = arith.constant dense<0.000000e+00> : vector<128xf32>
    %22 = vector.multi_reduction <add>, %21, %cst_13 [1] : vector<128x128xf32> to vector<128xf32>
    %23 = vector.shape_cast %22 : vector<128xf32> to vector<128x1xf32>
    %cst_14 = arith.constant 1.280000e+02 : f32
    %24 = vector.broadcast %cst_14 : f32 to vector<128x1xf32>
    %25 = arith.divf %23, %24 : vector<128x1xf32>
    %26 = arith.mulf %20, %20 : vector<128x1xf32>
    %27 = arith.subf %25, %26 : vector<128x1xf32>
    %cst_15 = arith.constant 0.000000e+00 : f32
    %28 = vector.broadcast %cst_15 : f32 to vector<128x1xf32>
    %29 = arith.maximumf %27, %28 : vector<128x1xf32>
    %30 = vector.broadcast %20 : vector<128x1xf32> to vector<128x128xf32>
    %31 = arith.subf %16, %30 : vector<128x128xf32>
    %cst_16 = arith.constant 9.99999996E-13 : f32
    %32 = vector.broadcast %cst_16 : f32 to vector<128x1xf32>
    %33 = arith.addf %29, %32 : vector<128x1xf32>
    %34 = math.rsqrt %33 : vector<128x1xf32>
    %35 = vector.broadcast %34 : vector<128x1xf32> to vector<128x128xf32>
    %36 = arith.mulf %31, %35 : vector<128x128xf32>
    %37 = vector.broadcast %2 : vector<1x128xf32> to vector<128x128xf32>
    %38 = arith.mulf %36, %37 : vector<128x128xf32>
    %39 = vector.broadcast %3 : vector<1x128xf32> to vector<128x128xf32>
    %40 = arith.addf %38, %39 : vector<128x128xf32>
    %41 = vector.broadcast %4 : vector<1x128xf32> to vector<128x128xf32>
    %42 = arith.mulf %40, %41 : vector<128x128xf32>
    %cst_17 = arith.constant dense<0.000000e+00> : vector<128xf32>
    %43 = vector.multi_reduction <add>, %42, %cst_17 [1] : vector<128x128xf32> to vector<128xf32>
    %c0_18 = arith.constant 0 : index
    %c0_19 = arith.constant 0 : index
    %44 = memref.load %arg4[%c0_18, %c0_19] : memref<1x1xf32, #tpu.memory_space<smem>>
    %45 = vector.broadcast %44 : f32 to vector<128xf32>
    %46 = arith.addf %43, %45 : vector<128xf32>
    %47 = vector.shape_cast %46 : vector<128xf32> to vector<1x128xf32>
    %c0_20 = arith.constant 0 : index
    %c0_21 = arith.constant 0 : index
    %48 = vector.load %arg5[%c0_20, %c0_21] : memref<1x128xf32, #tpu.memory_space<vmem>>, vector<1x128xf32>
    tpu.vector_store %arg5[%c0_20, %c0_21], %47 {strides = array<i32>} : memref<1x128xf32, #tpu.memory_space<vmem>>, vector<1x128xf32>,
    return
  }
  func.func @transform_0(%arg0: i32) -> (i32, i32) {
    %c0_i32 = arith.constant 0 : i32
    %c0_i32_0 = arith.constant 0 : i32
    return %arg0, %c0_i32 : i32, i32
  }
  func.func @transform_1(%arg0: i32) -> (i32, i32) {
    %c0_i32 = arith.constant 0 : i32
    %c0_i32_0 = arith.constant 0 : i32
    %c0_i32_1 = arith.constant 0 : i32
    return %c0_i32, %c0_i32_0 : i32, i32
  }
  func.func @transform_2(%arg0: i32) -> (i32, i32) {
    %c0_i32 = arith.constant 0 : i32
    %c0_i32_0 = arith.constant 0 : i32
    %c0_i32_1 = arith.constant 0 : i32
    return %c0_i32, %c0_i32_0 : i32, i32
  }
  func.func @transform_3(%arg0: i32) -> (i32, i32) {
    %c0_i32 = arith.constant 0 : i32
    %c0_i32_0 = arith.constant 0 : i32
    %c0_i32_1 = arith.constant 0 : i32
    return %c0_i32, %c0_i32_0 : i32, i32
  }
  func.func @transform_4(%arg0: i32) -> (i32, i32) {
    %c0_i32 = arith.constant 0 : i32
    %c0_i32_0 = arith.constant 0 : i32
    return %c0_i32, %arg0 : i32, i32
  }
}

</mosaic_0001>

<llo_original>
// kernel: tpu_custom_call.1
$region0: #{tpu_custom_call.1}
  #allocation0 [shape = 'u32[]', space=smem, size = 0x4, offset = 0x4, fixed_abs, tag = 'smem constant byte address 0x4 - core index']
  #allocation1 [shape = 'u32[144,128]{1,0:T(1,128)}', space=vmem, size = 0x12000, scoped, tag = 'internal scratch']
  #allocation2 [shape = 'f32[1,1]{1,0:T(1,128)S(6)}', space=smem, size = 0x200, scoped, tag = 'scoped memory for tpu_custom_call.1']
  %s0 = inlined_call_operand.hbm [shape: bf16[16,256], index: 0, kind: input, shape index: {}]
  %s1 = inlined_call_operand.hbm [shape: bf16[256,128], index: 1, kind: input, shape index: {}]
  %s2 = inlined_call_operand.vmem [shape: f32[4,128], index: 2, kind: input, shape index: {}]
  %s3 = inlined_call_operand.<no memory space> [shape: f32[1,1], index: 3, kind: input, shape index: {}]
  %s4 = inlined_call_operand.hbm [shape: f32[1,16], index: 4, kind: output, shape index: {}]
  %s5 = sld [smem:[#allocation0]]
  $region34: #{tpu_custom_call.1} parent=0
    _
  %s7 = ssub.s32 1, %s5
  %s8 = scalar_select 0, %s7, %s5
  %9 = sst [smem:[#allocation2]] %s3
  $region1: #{tpu_custom_call.1} parent=0
    #allocation3 [shape = 'u8[65536]{0}', space=vmem, size = 0x10000, scoped, tag = 'input window, operand 0, single buffered']
    #allocation4 [shape = 's32[1]{0}', space=sflag, size = 0x4, scoped, tag = 'scoped memory for tpu_custom_call.1']
    #allocation5 [shape = 's32[1]{0}', space=sflag, size = 0x4, scoped, tag = 'scoped memory for tpu_custom_call.1']
    #allocation6 [shape = 'u8[65536]{0}', space=vmem, size = 0x10000, scoped, tag = 'input window, operand 1, single buffered']
    #allocation7 [shape = 's32[1]{0}', space=sflag, size = 0x4, scoped, tag = 'scoped memory for tpu_custom_call.1']
    #allocation8 [shape = 'u8[512]{0}', space=vmem, size = 0x400, scoped, tag = 'output window, operand 0, single buffered']
    %10 = vsyncpa [#allocation4], 0
    %11 = vsyncpa [#allocation7], 0
    %12 = vsyncpa [#allocation5], 0
    // Predicated region
    $region2: #{tpu_custom_call.1} parent=1 // pred_check
      _
    $region3: #{tpu_custom_call.1} parent=1 // pred_check_branch
      %14 = sbr.rel (0) target = $region5
    $region4: #{tpu_custom_call.1} parent=1 // pred_region
      %s16 = ssub.s32 2048, 256
      %17 = vsyncadd [#allocation4], %s16
      %s18 = sshll.u32 [#allocation3], 4
      %s19 = int_to_ptr.vmem [resolvable:$true] %s18
      %24 = dma.hbm_to_vmem [thread:$0]  %s0, 256, %s19, [#allocation4], 128, 128, 8
    $region5: #{tpu_custom_call.1} parent=1 // pred_fallthru
      _
    // Predicated region
    $region6: #{tpu_custom_call.1} parent=1 // pred_check
      _
    $region7: #{tpu_custom_call.1} parent=1 // pred_check_branch
      %26 = sbr.rel (0) target = $region9
    $region8: #{tpu_custom_call.1} parent=1 // pred_region
      %s28 = ssub.s32 2048, 2048
      %29 = vsyncadd [#allocation7], %s28
      %s30 = sshll.u32 [#allocation6], 4
      %s31 = int_to_ptr.vmem [resolvable:$true] %s30
      %36 = dma.hbm_to_vmem [thread:$0]  %s1, 2048, %s31, [#allocation7], 64, 64, 4
    $region9: #{tpu_custom_call.1} parent=1 // pred_fallthru
      _
    // Predicated region
    $region10: #{tpu_custom_call.1} parent=1 // pred_check
      _
    $region11: #{tpu_custom_call.1} parent=1 // pred_check_branch
      %38 = sbr.rel (0) target = $region13
    $region12: #{tpu_custom_call.1} parent=1 // pred_region
      _
    $region13: #{tpu_custom_call.1} parent=1 // pred_fallthru
      _
    // Predicated region
    $region14: #{tpu_custom_call.1} parent=1 // pred_check
      _
    $region15: #{tpu_custom_call.1} parent=1 // pred_check_branch
      %40 = sbr.rel (0) target = $region17
    $region16: #{tpu_custom_call.1} parent=1 // pred_region
      _
    $region17: #{tpu_custom_call.1} parent=1 // pred_fallthru
      _
    // Predicated region
    $region18: #{tpu_custom_call.1} parent=1 // pred_check
      _
    $region19: #{tpu_custom_call.1} parent=1 // pred_check_branch
      %42 = sbr.rel (0) target = $region21
    $region20: #{tpu_custom_call.1} parent=1 // pred_region
      %43 = dma.done [#allocation4], 2048
    $region21: #{tpu_custom_call.1} parent=1 // pred_fallthru
      _
    // Predicated region
    $region22: #{tpu_custom_call.1} parent=1 // pred_check
      _
    $region23: #{tpu_custom_call.1} parent=1 // pred_check_branch
      %45 = sbr.rel (0) target = $region25
    $region24: #{tpu_custom_call.1} parent=1 // pred_region
      %46 = dma.done [#allocation7], 2048
    $region25: #{tpu_custom_call.1} parent=1 // pred_fallthru
      _
    %v48 = vld [vmem:[#allocation3] sm:$0xff]
    %v49 = vld [vmem:[#allocation3 + $0x8] sm:$0xff]
    %v50 = vld [vmem:[#allocation3 + $0x10] sm:$0xff]
    %v51 = vld [vmem:[#allocation3 + $0x18] sm:$0xff]
    %v52 = vld [vmem:[#allocation3 + $0x20] sm:$0xff]
    %v53 = vld [vmem:[#allocation3 + $0x28] sm:$0xff]
    %v54 = vld [vmem:[#allocation3 + $0x30] sm:$0xff]
    %v55 = vld [vmem:[#allocation3 + $0x38] sm:$0xff]
    %v56 = vld [vmem:[#allocation3 + $0x40] sm:$0xff]
    %v57 = vld [vmem:[#allocation3 + $0x48] sm:$0xff]
    %v58 = vld [vmem:[#allocation3 + $0x50] sm:$0xff]
    %v59 = vld [vmem:[#allocation3 + $0x58] sm:$0xff]
    %v60 = vld [vmem:[#allocation3 + $0x60] sm:$0xff]
    %v61 = vld [vmem:[#allocation3 + $0x68] sm:$0xff]
    %v62 = vld [vmem:[#allocation3 + $0x70] sm:$0xff]
    %v63 = vld [vmem:[#allocation3 + $0x78] sm:$0xff]
    %v64 = vld [vmem:[%s2] sm:$0x1]
    %v65 = vld [vmem:[%s2 + $0x1] sm:$0x1]
    %v66 = vld [vmem:[%s2 + $0x2] sm:$0x1]
    %v67 = vld [vmem:[%s2 + $0x3] sm:$0x1]
    %v68 = vld [vmem:[#allocation6] sm:$0xf]
    %v69 = vld [vmem:[#allocation6 + $0x4] sm:$0xf]
    %v70 = vld [vmem:[#allocation6 + $0x8] sm:$0xf]
    %v71 = vld [vmem:[#allocation6 + $0xc] sm:$0xf]
    %v72 = vld [vmem:[#allocation6 + $0x10] sm:$0xf]
    %v73 = vld [vmem:[#allocation6 + $0x14] sm:$0xf]
    %v74 = vld [vmem:[#allocation6 + $0x18] sm:$0xf]
    %v75 = vld [vmem:[#allocation6 + $0x1c] sm:$0xf]
    %v76 = vld [vmem:[#allocation6 + $0x20] sm:$0xf]
    %v77 = vld [vmem:[#allocation6 + $0x24] sm:$0xf]
    %v78 = vld [vmem:[#allocation6 + $0x28] sm:$0xf]
    %v79 = vld [vmem:[#allocation6 + $0x2c] sm:$0xf]
    %v80 = vld [vmem:[#allocation6 + $0x30] sm:$0xf]
    %v81 = vld [vmem:[#allocation6 + $0x34] sm:$0xf]
    %v82 = vld [vmem:[#allocation6 + $0x38] sm:$0xf]
    %v83 = vld [vmem:[#allocation6 + $0x3c] sm:$0xf]
    %v84 = vld [vmem:[#allocation6 + $0x40] sm:$0xf]
    %v85 = vld [vmem:[#allocation6 + $0x44] sm:$0xf]
    %v86 = vld [vmem:[#allocation6 + $0x48] sm:$0xf]
    %v87 = vld [vmem:[#allocation6 + $0x4c] sm:$0xf]
    %v88 = vld [vmem:[#allocation6 + $0x50] sm:$0xf]
    %v89 = vld [vmem:[#allocation6 + $0x54] sm:$0xf]
    %v90 = vld [vmem:[#allocation6 + $0x58] sm:$0xf]
    %v91 = vld [vmem:[#allocation6 + $0x5c] sm:$0xf]
    %v92 = vld [vmem:[#allocation6 + $0x60] sm:$0xf]
    %v93 = vld [vmem:[#allocation6 + $0x64] sm:$0xf]
    %v94 = vld [vmem:[#allocation6 + $0x68] sm:$0xf]
    %v95 = vld [vmem:[#allocation6 + $0x6c] sm:$0xf]
    %v96 = vld [vmem:[#allocation6 + $0x70] sm:$0xf]
    %v97 = vld [vmem:[#allocation6 + $0x74] sm:$0xf]
    %v98 = vld [vmem:[#allocation6 + $0x78] sm:$0xf]
    %v99 = vld [vmem:[#allocation6 + $0x7c] sm:$0xf]
    %v100 = vlaneseq
    %v101 = vshrl.u32 %v100, 7
    %v102 = vsub.s32 0, %v101
    %v103 = vrot.slane %v64, %v102
    %v120 = vunpack.c.l.b16 %v48
    %v121 = vunpack.c.h.b16 %v48
    %v122 = vunpack.c.l.b16 %v49
    %v123 = vunpack.c.h.b16 %v49
    %v124 = vunpack.c.l.b16 %v50
    %v125 = vunpack.c.h.b16 %v50
    %v126 = vunpack.c.l.b16 %v51
    %v127 = vunpack.c.h.b16 %v51
    %v128 = vunpack.c.l.b16 %v52
    %v129 = vunpack.c.h.b16 %v52
    %v130 = vunpack.c.l.b16 %v53
    %v131 = vunpack.c.h.b16 %v53
    %v132 = vunpack.c.l.b16 %v54
    %v133 = vunpack.c.h.b16 %v54
    %v134 = vunpack.c.l.b16 %v55
    %v135 = vunpack.c.h.b16 %v55
    %v136 = vunpack.c.l.b16 %v56
    %v137 = vunpack.c.h.b16 %v56
    %v138 = vunpack.c.l.b16 %v57
    %v139 = vunpack.c.h.b16 %v57
    %v140 = vunpack.c.l.b16 %v58
    %v141 = vunpack.c.h.b16 %v58
    %v142 = vunpack.c.l.b16 %v59
    %v143 = vunpack.c.h.b16 %v59
    %v144 = vunpack.c.l.b16 %v60
    %v145 = vunpack.c.h.b16 %v60
    %v146 = vunpack.c.l.b16 %v61
    %v147 = vunpack.c.h.b16 %v61
    %v148 = vunpack.c.l.b16 %v62
    %v149 = vunpack.c.h.b16 %v62
    %v150 = vunpack.c.l.b16 %v63
    %v151 = vunpack.c.h.b16 %v63
    %v152 = vpack.c.b16 %v122, %v120
    %v153 = vpack.c.b16 %v123, %v121
    %v154 = vpack.c.b16 %v126, %v124
    %v155 = vpack.c.b16 %v127, %v125
    %v156 = vpack.c.b16 %v130, %v128
    %v157 = vpack.c.b16 %v131, %v129
    %v158 = vpack.c.b16 %v134, %v132
    %v159 = vpack.c.b16 %v135, %v133
    %v160 = vpack.c.b16 %v138, %v136
    %v161 = vpack.c.b16 %v139, %v137
    %v162 = vpack.c.b16 %v142, %v140
    %v163 = vpack.c.b16 %v143, %v141
    %v164 = vpack.c.b16 %v146, %v144
    %v165 = vpack.c.b16 %v147, %v145
    %v166 = vpack.c.b16 %v150, %v148
    %v167 = vpack.c.b16 %v151, %v149
    %v216 = vunpack.c.l.b16 %v68
    %v217 = vunpack.c.l.b16 %v69
    %v218 = vunpack.c.l.b16 %v70
    %v219 = vunpack.c.l.b16 %v71
    %v220 = vunpack.c.l.b16 %v72
    %v221 = vunpack.c.l.b16 %v73
    %v222 = vunpack.c.l.b16 %v74
    %v223 = vunpack.c.l.b16 %v75
    %v224 = vunpack.c.l.b16 %v76
    %v225 = vunpack.c.l.b16 %v77
    %v226 = vunpack.c.l.b16 %v78
    %v227 = vunpack.c.l.b16 %v79
    %v228 = vunpack.c.l.b16 %v80
    %v229 = vunpack.c.l.b16 %v81
    %v230 = vunpack.c.l.b16 %v82
    %v231 = vunpack.c.l.b16 %v83
    %v232 = vunpack.c.l.b16 %v84
    %v233 = vunpack.c.l.b16 %v85
    %v234 = vunpack.c.l.b16 %v86
    %v235 = vunpack.c.l.b16 %v87
    %v236 = vunpack.c.l.b16 %v88
    %v237 = vunpack.c.l.b16 %v89
    %v238 = vunpack.c.l.b16 %v90
    %v239 = vunpack.c.l.b16 %v91
    %v240 = vunpack.c.l.b16 %v92
    %v241 = vunpack.c.l.b16 %v93
    %v242 = vunpack.c.l.b16 %v94
    %v243 = vunpack.c.l.b16 %v95
    %v244 = vunpack.c.l.b16 %v96
    %v245 = vunpack.c.l.b16 %v97
    %v246 = vunpack.c.l.b16 %v98
    %v247 = vunpack.c.l.b16 %v99
    %v248 = vpack.c.b16 %v217, %v216
    %v249 = vpack.c.b16 %v219, %v218
    %v250 = vpack.c.b16 %v221, %v220
    %v251 = vpack.c.b16 %v223, %v222
    %v252 = vpack.c.b16 %v225, %v224
    %v253 = vpack.c.b16 %v227, %v226
    %v254 = vpack.c.b16 %v229, %v228
    %v255 = vpack.c.b16 %v231, %v230
    %v256 = vpack.c.b16 %v233, %v232
    %v257 = vpack.c.b16 %v235, %v234
    %v258 = vpack.c.b16 %v237, %v236
    %v259 = vpack.c.b16 %v239, %v238
    %v260 = vpack.c.b16 %v241, %v240
    %v261 = vpack.c.b16 %v243, %v242
    %v262 = vpack.c.b16 %v245, %v244
    %v263 = vpack.c.b16 %v247, %v246
    %280 = vmatprep.subr.bf16.mxu0 0
    %281 = vmatpush1.bf16.msra.mxu0 %v255
    %282 = vmatprep.subr.bf16.mxu0 0
    %283 = vmatpush1.bf16.msra.mxu0 %v254
    %284 = vmatprep.subr.bf16.mxu0 0
    %285 = vmatpush1.bf16.msra.mxu0 %v253
    %286 = vmatprep.subr.bf16.mxu0 0
    %287 = vmatpush1.bf16.msra.mxu0 %v252
    %288 = vmatprep.subr.bf16.mxu0 0
    %289 = vmatpush1.bf16.msra.mxu0 %v251
    %290 = vmatprep.subr.bf16.mxu0 0
    %291 = vmatpush1.bf16.msra.mxu0 %v250
    %292 = vmatprep.subr.bf16.mxu0 0
    %293 = vmatpush1.bf16.msra.mxu0 %v249
    %294 = vmatprep.subr.bf16.mxu0 0
    %295 = vmatpush1.bf16.msra.mxu0 %v248
    %296 = vmatprep.subr.bf16.mxu0 0
    %297 = vmatpush2.bf16.msra.mxu0 %v263
    %298 = vmatprep.subr.bf16.mxu0 0
    %299 = vmatpush2.bf16.msra.mxu0 %v262
    %300 = vmatprep.subr.bf16.mxu0 0
    %301 = vmatpush2.bf16.msra.mxu0 %v261
    %302 = vmatprep.subr.bf16.mxu0 0
    %303 = vmatpush2.bf16.msra.mxu0 %v260
    %304 = vmatprep.subr.bf16.mxu0 0
    %305 = vmatpush2.bf16.msra.mxu0 %v259
    %306 = vmatprep.subr.bf16.mxu0 0
    %307 = vmatpush2.bf16.msra.mxu0 %v258
    %308 = vmatprep.subr.bf16.mxu0 0
    %309 = vmatpush2.bf16.msra.mxu0 %v257
    %310 = vmatprep.subr.bf16.mxu0 0
    %311 = vmatpush2.bf16.msra.mxu0 %v256
    %312 = vmatprep.mubr.bf16.mxu0 %v153
    %313 = vmatmul.mubr.bf16.gmra.mxu0 %v152
    %v314 = vpop.f32.mrf.mxu0
    %v315 = vadd.f32 %v103, %v314
    %v316 = vpop.f32.mrf.mxu0
    %v317 = vpop.f32.mrf.mxu0
    %v318 = vadd.f32 %v103, %v317
    %v319 = vpop.f32.mrf.mxu0
    %320 = vmatprep.mubr.bf16.mxu0 %v155
    %321 = vmatmul.mubr.bf16.gmra.mxu0 %v154
    %v322 = vpop.f32.mrf.mxu0
    %v323 = vadd.f32 %v103, %v322
    %v324 = vpop.f32.mrf.mxu0
    %v325 = vpop.f32.mrf.mxu0
    %v326 = vadd.f32 %v103, %v325
    %v327 = vpop.f32.mrf.mxu0
    %328 = vmatprep.mubr.bf16.mxu0 %v157
    %329 = vmatmul.mubr.bf16.gmra.mxu0 %v156
    %v330 = vpop.f32.mrf.mxu0
    %v331 = vadd.f32 %v103, %v330
    %v332 = vpop.f32.mrf.mxu0
    %v333 = vpop.f32.mrf.mxu0
    %v334 = vadd.f32 %v103, %v333
    %v335 = vpop.f32.mrf.mxu0
    %336 = vmatprep.mubr.bf16.mxu0 %v159
    %337 = vmatmul.mubr.bf16.gmra.mxu0 %v158
    %v338 = vpop.f32.mrf.mxu0
    %v339 = vadd.f32 %v103, %v338
    %v340 = vpop.f32.mrf.mxu0
    %v341 = vpop.f32.mrf.mxu0
    %v342 = vadd.f32 %v103, %v341
    %v343 = vpop.f32.mrf.mxu0
    %344 = vmatprep.mubr.bf16.mxu0 %v161
    %345 = vmatmul.mubr.bf16.gmra.mxu0 %v160
    %v346 = vpop.f32.mrf.mxu0
    %v347 = vadd.f32 %v103, %v346
    %v348 = vpop.f32.mrf.mxu0
    %v349 = vpop.f32.mrf.mxu0
    %v350 = vadd.f32 %v103, %v349
    %v351 = vpop.f32.mrf.mxu0
    %352 = vmatprep.mubr.bf16.mxu0 %v163
    %353 = vmatmul.mubr.bf16.gmra.mxu0 %v162
    %v354 = vpop.f32.mrf.mxu0
    %v355 = vadd.f32 %v103, %v354
    %v356 = vpop.f32.mrf.mxu0
    %v357 = vpop.f32.mrf.mxu0
    %v358 = vadd.f32 %v103, %v357
    %v359 = vpop.f32.mrf.mxu0
    %360 = vmatprep.mubr.bf16.mxu0 %v165
    %361 = vmatmul.mubr.bf16.gmra.mxu0 %v164
    %v362 = vpop.f32.mrf.mxu0
    %v363 = vadd.f32 %v103, %v362
    %v364 = vpop.f32.mrf.mxu0
    %v365 = vpop.f32.mrf.mxu0
    %v366 = vadd.f32 %v103, %v365
    %v367 = vpop.f32.mrf.mxu0
    %368 = vmatprep.mubr.bf16.mxu0 %v167
    %369 = vmatmul.mubr.bf16.gmra.mxu0 %v166
    %v370 = vpop.f32.mrf.mxu0
    %v371 = vadd.f32 %v103, %v370
    %v372 = vpop.f32.mrf.mxu0
    %v373 = vpop.f32.mrf.mxu0
    %v374 = vadd.f32 %v103, %v373
    %v375 = vpop.f32.mrf.mxu0
    %376 = vdwg.mxu0
    %v377 = vmul.f32 %v315, 0.5
    %v378 = vmul.f32 %v318, 0.5
    %v379 = vmul.f32 %v323, 0.5
    %v380 = vmul.f32 %v326, 0.5
    %v381 = vmul.f32 %v331, 0.5
    %v382 = vmul.f32 %v334, 0.5
    %v383 = vmul.f32 %v339, 0.5
    %v384 = vmul.f32 %v342, 0.5
    %v385 = vmul.f32 %v347, 0.5
    %v386 = vmul.f32 %v350, 0.5
    %v387 = vmul.f32 %v355, 0.5
    %v388 = vmul.f32 %v358, 0.5
    %v389 = vmul.f32 %v363, 0.5
    %v390 = vmul.f32 %v366, 0.5
    %v391 = vmul.f32 %v371, 0.5
    %v392 = vmul.f32 %v374, 0.5
    %v393 = vmul.f32 %v315, 0.70710677
    %v394 = vmul.f32 %v318, 0.70710677
    %v395 = vmul.f32 %v323, 0.70710677
    %v396 = vmul.f32 %v326, 0.70710677
    %v397 = vmul.f32 %v331, 0.70710677
    %v398 = vmul.f32 %v334, 0.70710677
    %v399 = vmul.f32 %v339, 0.70710677
    %v400 = vmul.f32 %v342, 0.70710677
    %v401 = vmul.f32 %v347, 0.70710677
    %v402 = vmul.f32 %v350, 0.70710677
    %v403 = vmul.f32 %v355, 0.70710677
    %v404 = vmul.f32 %v358, 0.70710677
    %v405 = vmul.f32 %v363, 0.70710677
    %v406 = vmul.f32 %v366, 0.70710677
    %v407 = vmul.f32 %v371, 0.70710677
    %v408 = vmul.f32 %v374, 0.70710677
    %v409 = verf.f32.pop %v393
    %v410 = verf.f32.pop %v394
    %v411 = verf.f32.pop %v395
    %v412 = verf.f32.pop %v396
    %v413 = verf.f32.pop %v397
    %v414 = verf.f32.pop %v398
    %v415 = verf.f32.pop %v399
    %v416 = verf.f32.pop %v400
    %v417 = verf.f32.pop %v401
    %v418 = verf.f32.pop %v402
    %v419 = verf.f32.pop %v403
    %v420 = verf.f32.pop %v404
    %v421 = verf.f32.pop %v405
    %v422 = verf.f32.pop %v406
    %v423 = verf.f32.pop %v407
    %v424 = verf.f32.pop %v408
    %v425 = vadd.f32 %v409, 1.0
    %v426 = vadd.f32 %v410, 1.0
    %v427 = vadd.f32 %v411, 1.0
    %v428 = vadd.f32 %v412, 1.0
    %v429 = vadd.f32 %v413, 1.0
    %v430 = vadd.f32 %v414, 1.0
    %v431 = vadd.f32 %v415, 1.0
    %v432 = vadd.f32 %v416, 1.0
    %v433 = vadd.f32 %v417, 1.0
    %v434 = vadd.f32 %v418, 1.0
    %v435 = vadd.f32 %v419, 1.0
    %v436 = vadd.f32 %v420, 1.0
    %v437 = vadd.f32 %v421, 1.0
    %v438 = vadd.f32 %v422, 1.0
    %v439 = vadd.f32 %v423, 1.0
    %v440 = vadd.f32 %v424, 1.0
    %v441 = vmul.f32 %v377, %v425
    %v442 = vmul.f32 %v378, %v426
    %v443 = vmul.f32 %v379, %v427
    %v444 = vmul.f32 %v380, %v428
    %v445 = vmul.f32 %v381, %v429
    %v446 = vmul.f32 %v382, %v430
    %v447 = vmul.f32 %v383, %v431
    %v448 = vmul.f32 %v384, %v432
    %v449 = vmul.f32 %v385, %v433
    %v450 = vmul.f32 %v386, %v434
    %v451 = vmul.f32 %v387, %v435
    %v452 = vmul.f32 %v388, %v436
    %v453 = vmul.f32 %v389, %v437
    %v454 = vmul.f32 %v390, %v438
    %v455 = vmul.f32 %v391, %v439
    %v456 = vmul.f32 %v392, %v440
    %457 = vadd.xlane.f32.xlu0 %v441
    %v458 = vpop.xlane.xlu0 %457
    %459 = vadd.xlane.f32.xlu0 %v442
    %v460 = vpop.xlane.xlu0 %459
    %461 = vadd.xlane.f32.xlu0 %v443
    %v462 = vpop.xlane.xlu0 %461
    %463 = vadd.xlane.f32.xlu0 %v444
    %v464 = vpop.xlane.xlu0 %463
    %465 = vadd.xlane.f32.xlu0 %v445
    %v466 = vpop.xlane.xlu0 %465
    %467 = vadd.xlane.f32.xlu0 %v446
    %v468 = vpop.xlane.xlu0 %467
    %469 = vadd.xlane.f32.xlu0 %v447
    %v470 = vpop.xlane.xlu0 %469
    %471 = vadd.xlane.f32.xlu0 %v448
    %v472 = vpop.xlane.xlu0 %471
    %473 = vadd.xlane.f32.xlu0 %v449
    %v474 = vpop.xlane.xlu0 %473
    %475 = vadd.xlane.f32.xlu0 %v450
    %v476 = vpop.xlane.xlu0 %475
    %477 = vadd.xlane.f32.xlu0 %v451
    %v478 = vpop.xlane.xlu0 %477
    %479 = vadd.xlane.f32.xlu0 %v452
    %v480 = vpop.xlane.xlu0 %479
    %481 = vadd.xlane.f32.xlu0 %v453
    %v482 = vpop.xlane.xlu0 %481
    %483 = vadd.xlane.f32.xlu0 %v454
    %v484 = vpop.xlane.xlu0 %483
    %485 = vadd.xlane.f32.xlu0 %v455
    %v486 = vpop.xlane.xlu0 %485
    %487 = vadd.xlane.f32.xlu0 %v456
    %v488 = vpop.xlane.xlu0 %487
    %v489 = vrcp.pop 128.0
    %v490 = vmul.f32 %v458, %v489
    %v491 = vmul.f32 %v460, %v489
    %v492 = vmul.f32 %v462, %v489
    %v493 = vmul.f32 %v464, %v489
    %v494 = vmul.f32 %v466, %v489
    %v495 = vmul.f32 %v468, %v489
    %v496 = vmul.f32 %v470, %v489
    %v497 = vmul.f32 %v472, %v489
    %v498 = vmul.f32 %v474, %v489
    %v499 = vmul.f32 %v476, %v489
    %v500 = vmul.f32 %v478, %v489
    %v501 = vmul.f32 %v480, %v489
    %v502 = vmul.f32 %v482, %v489
    %v503 = vmul.f32 %v484, %v489
    %v504 = vmul.f32 %v486, %v489
    %v505 = vmul.f32 %v488, %v489
    %v506 = vmul.f32 %v441, %v441
    %v507 = vmul.f32 %v442, %v442
    %v508 = vmul.f32 %v443, %v443
    %v509 = vmul.f32 %v444, %v444
    %v510 = vmul.f32 %v445, %v445
    %v511 = vmul.f32 %v446, %v446
    %v512 = vmul.f32 %v447, %v447
    %v513 = vmul.f32 %v448, %v448
    %v514 = vmul.f32 %v449, %v449
    %v515 = vmul.f32 %v450, %v450
    %v516 = vmul.f32 %v451, %v451
    %v517 = vmul.f32 %v452, %v452
    %v518 = vmul.f32 %v453, %v453
    %v519 = vmul.f32 %v454, %v454
    %v520 = vmul.f32 %v455, %v455
    %v521 = vmul.f32 %v456, %v456
    %522 = vadd.xlane.f32.xlu0 %v506
    %v523 = vpop.xlane.xlu0 %522
    %524 = vadd.xlane.f32.xlu0 %v507
    %v525 = vpop.xlane.xlu0 %524
    %526 = vadd.xlane.f32.xlu0 %v508
    %v527 = vpop.xlane.xlu0 %526
    %528 = vadd.xlane.f32.xlu0 %v509
    %v529 = vpop.xlane.xlu0 %528
    %530 = vadd.xlane.f32.xlu0 %v510
    %v531 = vpop.xlane.xlu0 %530
    %532 = vadd.xlane.f32.xlu0 %v511
    %v533 = vpop.xlane.xlu0 %532
    %534 = vadd.xlane.f32.xlu0 %v512
    %v535 = vpop.xlane.xlu0 %534
    %536 = vadd.xlane.f32.xlu0 %v513
    %v537 = vpop.xlane.xlu0 %536
    %538 = vadd.xlane.f32.xlu0 %v514
    %v539 = vpop.xlane.xlu0 %538
    %540 = vadd.xlane.f32.xlu0 %v515
    %v541 = vpop.xlane.xlu0 %540
    %542 = vadd.xlane.f32.xlu0 %v516
    %v543 = vpop.xlane.xlu0 %542
    %544 = vadd.xlane.f32.xlu0 %v517
    %v545 = vpop.xlane.xlu0 %544
    %546 = vadd.xlane.f32.xlu0 %v518
    %v547 = vpop.xlane.xlu0 %546
    %548 = vadd.xlane.f32.xlu0 %v519
    %v549 = vpop.xlane.xlu0 %548
    %550 = vadd.xlane.f32.xlu0 %v520
    %v551 = vpop.xlane.xlu0 %550
    %552 = vadd.xlane.f32.xlu0 %v521
    %v553 = vpop.xlane.xlu0 %552
    %v554 = vmul.f32 %v523, %v489
    %v555 = vmul.f32 %v525, %v489
    %v556 = vmul.f32 %v527, %v489
    %v557 = vmul.f32 %v529, %v489
    %v558 = vmul.f32 %v531, %v489
    %v559 = vmul.f32 %v533, %v489
    %v560 = vmul.f32 %v535, %v489
    %v561 = vmul.f32 %v537, %v489
    %v562 = vmul.f32 %v539, %v489
    %v563 = vmul.f32 %v541, %v489
    %v564 = vmul.f32 %v543, %v489
    %v565 = vmul.f32 %v545, %v489
    %v566 = vmul.f32 %v547, %v489
    %v567 = vmul.f32 %v549, %v489
    %v568 = vmul.f32 %v551, %v489
    %v569 = vmul.f32 %v553, %v489
    %v570 = vmul.f32 %v490, %v490
    %v571 = vmul.f32 %v491, %v491
    %v572 = vmul.f32 %v492, %v492
    %v573 = vmul.f32 %v493, %v493
    %v574 = vmul.f32 %v494, %v494
    %v575 = vmul.f32 %v495, %v495
    %v576 = vmul.f32 %v496, %v496
    %v577 = vmul.f32 %v497, %v497
    %v578 = vmul.f32 %v498, %v498
    %v579 = vmul.f32 %v499, %v499
    %v580 = vmul.f32 %v500, %v500
    %v581 = vmul.f32 %v501, %v501
    %v582 = vmul.f32 %v502, %v502
    %v583 = vmul.f32 %v503, %v503
    %v584 = vmul.f32 %v504, %v504
    %v585 = vmul.f32 %v505, %v505
    %v586 = vsub.f32 %v554, %v570
    %v587 = vsub.f32 %v555, %v571
    %v588 = vsub.f32 %v556, %v572
    %v589 = vsub.f32 %v557, %v573
    %v590 = vsub.f32 %v558, %v574
    %v591 = vsub.f32 %v559, %v575
    %v592 = vsub.f32 %v560, %v576
    %v593 = vsub.f32 %v561, %v577
    %v594 = vsub.f32 %v562, %v578
    %v595 = vsub.f32 %v563, %v579
    %v596 = vsub.f32 %v564, %v580
    %v597 = vsub.f32 %v565, %v581
    %v598 = vsub.f32 %v566, %v582
    %v599 = vsub.f32 %v567, %v583
    %v600 = vsub.f32 %v568, %v584
    %v601 = vsub.f32 %v569, %v585
    %v602 = vmax.f32 %v586, 0.0
    %v603 = vmax.f32 %v587, 0.0
    %v604 = vmax.f32 %v588, 0.0
    %v605 = vmax.f32 %v589, 0.0
    %v606 = vmax.f32 %v590, 0.0
    %v607 = vmax.f32 %v591, 0.0
    %v608 = vmax.f32 %v592, 0.0
    %v609 = vmax.f32 %v593, 0.0
    %v610 = vmax.f32 %v594, 0.0
    %v611 = vmax.f32 %v595, 0.0
    %v612 = vmax.f32 %v596, 0.0
    %v613 = vmax.f32 %v597, 0.0
    %v614 = vmax.f32 %v598, 0.0
    %v615 = vmax.f32 %v599, 0.0
    %v616 = vmax.f32 %v600, 0.0
    %v617 = vmax.f32 %v601, 0.0
    %v618 = vsub.f32 %v441, %v490
    %v619 = vsub.f32 %v442, %v491
    %v620 = vsub.f32 %v443, %v492
    %v621 = vsub.f32 %v444, %v493
    %v622 = vsub.f32 %v445, %v494
    %v623 = vsub.f32 %v446, %v495
    %v624 = vsub.f32 %v447, %v496
    %v625 = vsub.f32 %v448, %v497
    %v626 = vsub.f32 %v449, %v498
    %v627 = vsub.f32 %v450, %v499
    %v628 = vsub.f32 %v451, %v500
    %v629 = vsub.f32 %v452, %v501
    %v630 = vsub.f32 %v453, %v502
    %v631 = vsub.f32 %v454, %v503
    %v632 = vsub.f32 %v455, %v504
    %v633 = vsub.f32 %v456, %v505
    %v634 = vadd.f32 %v602, 1e-12
    %v635 = vadd.f32 %v603, 1e-12
    %v636 = vadd.f32 %v604, 1e-12
    %v637 = vadd.f32 %v605, 1e-12
    %v638 = vadd.f32 %v606, 1e-12
    %v639 = vadd.f32 %v607, 1e-12
    %v640 = vadd.f32 %v608, 1e-12
    %v641 = vadd.f32 %v609, 1e-12
    %v642 = vadd.f32 %v610, 1e-12
    %v643 = vadd.f32 %v611, 1e-12
    %v644 = vadd.f32 %v612, 1e-12
    %v645 = vadd.f32 %v613, 1e-12
    %v646 = vadd.f32 %v614, 1e-12
    %v647 = vadd.f32 %v615, 1e-12
    %v648 = vadd.f32 %v616, 1e-12
    %v649 = vadd.f32 %v617, 1e-12
    %v650 = vrsqrt.pop %v634
    %v651 = vrsqrt.pop %v635
    %v652 = vrsqrt.pop %v636
    %v653 = vrsqrt.pop %v637
    %v654 = vrsqrt.pop %v638
    %v655 = vrsqrt.pop %v639
    %v656 = vrsqrt.pop %v640
    %v657 = vrsqrt.pop %v641
    %v658 = vrsqrt.pop %v642
    %v659 = vrsqrt.pop %v643
    %v660 = vrsqrt.pop %v644
    %v661 = vrsqrt.pop %v645
    %v662 = vrsqrt.pop %v646
    %v663 = vrsqrt.pop %v647
    %v664 = vrsqrt.pop %v648
    %v665 = vrsqrt.pop %v649
    %v666 = vmul.f32 %v618, %v650
    %v667 = vmul.f32 %v619, %v651
    %v668 = vmul.f32 %v620, %v652
    %v669 = vmul.f32 %v621, %v653
    %v670 = vmul.f32 %v622, %v654
    %v671 = vmul.f32 %v623, %v655
    %v672 = vmul.f32 %v624, %v656
    %v673 = vmul.f32 %v625, %v657
    %v674 = vmul.f32 %v626, %v658
    %v675 = vmul.f32 %v627, %v659
    %v676 = vmul.f32 %v628, %v660
    %v677 = vmul.f32 %v629, %v661
    %v678 = vmul.f32 %v630, %v662
    %v679 = vmul.f32 %v631, %v663
    %v680 = vmul.f32 %v632, %v664
    %v681 = vmul.f32 %v633, %v665
    %v682 = vlaneseq
    %v683 = vshrl.u32 %v682, 7
    %v684 = vsub.s32 0, %v683
    %v685 = vrot.slane %v65, %v684
    %v686 = vmul.f32 %v666, %v685
    %v687 = vmul.f32 %v667, %v685
    %v688 = vmul.f32 %v668, %v685
    %v689 = vmul.f32 %v669, %v685
    %v690 = vmul.f32 %v670, %v685
    %v691 = vmul.f32 %v671, %v685
    %v692 = vmul.f32 %v672, %v685
    %v693 = vmul.f32 %v673, %v685
    %v694 = vmul.f32 %v674, %v685
    %v695 = vmul.f32 %v675, %v685
    %v696 = vmul.f32 %v676, %v685
    %v697 = vmul.f32 %v677, %v685
    %v698 = vmul.f32 %v678, %v685
    %v699 = vmul.f32 %v679, %v685
    %v700 = vmul.f32 %v680, %v685
    %v701 = vmul.f32 %v681, %v685
    %v702 = vlaneseq
    %v703 = vshrl.u32 %v702, 7
    %v704 = vsub.s32 0, %v703
    %v705 = vrot.slane %v66, %v704
    %v706 = vadd.f32 %v686, %v705
    %v707 = vadd.f32 %v687, %v705
    %v708 = vadd.f32 %v688, %v705
    %v709 = vadd.f32 %v689, %v705
    %v710 = vadd.f32 %v690, %v705
    %v711 = vadd.f32 %v691, %v705
    %v712 = vadd.f32 %v692, %v705
    %v713 = vadd.f32 %v693, %v705
    %v714 = vadd.f32 %v694, %v705
    %v715 = vadd.f32 %v695, %v705
    %v716 = vadd.f32 %v696, %v705
    %v717 = vadd.f32 %v697, %v705
    %v718 = vadd.f32 %v698, %v705
    %v719 = vadd.f32 %v699, %v705
    %v720 = vadd.f32 %v700, %v705
    %v721 = vadd.f32 %v701, %v705
    %v722 = vlaneseq
    %v723 = vshrl.u32 %v722, 7
    %v724 = vsub.s32 0, %v723
    %v725 = vrot.slane %v67, %v724
    %v726 = vmul.f32 %v706, %v725
    %v727 = vmul.f32 %v707, %v725
    %v728 = vmul.f32 %v708, %v725
    %v729 = vmul.f32 %v709, %v725
    %v730 = vmul.f32 %v710, %v725
    %v731 = vmul.f32 %v711, %v725
    %v732 = vmul.f32 %v712, %v725
    %v733 = vmul.f32 %v713, %v725
    %v734 = vmul.f32 %v714, %v725
    %v735 = vmul.f32 %v715, %v725
    %v736 = vmul.f32 %v716, %v725
    %v737 = vmul.f32 %v717, %v725
    %v738 = vmul.f32 %v718, %v725
    %v739 = vmul.f32 %v719, %v725
    %v740 = vmul.f32 %v720, %v725
    %v741 = vmul.f32 %v721, %v725
    %742 = vadd.xlane.f32.xlu0 %v726
    %v743 = vpop.xlane.xlu0 %742
    %744 = vadd.xlane.f32.xlu0 %v727
    %v745 = vpop.xlane.xlu0 %744
    %746 = vadd.xlane.f32.xlu0 %v728
    %v747 = vpop.xlane.xlu0 %746
    %748 = vadd.xlane.f32.xlu0 %v729
    %v749 = vpop.xlane.xlu0 %748
    %750 = vadd.xlane.f32.xlu0 %v730
    %v751 = vpop.xlane.xlu0 %750
    %752 = vadd.xlane.f32.xlu0 %v731
    %v753 = vpop.xlane.xlu0 %752
    %754 = vadd.xlane.f32.xlu0 %v732
    %v755 = vpop.xlane.xlu0 %754
    %756 = vadd.xlane.f32.xlu0 %v733
    %v757 = vpop.xlane.xlu0 %756
    %758 = vadd.xlane.f32.xlu0 %v734
    %v759 = vpop.xlane.xlu0 %758
    %760 = vadd.xlane.f32.xlu0 %v735
    %v761 = vpop.xlane.xlu0 %760
    %762 = vadd.xlane.f32.xlu0 %v736
    %v763 = vpop.xlane.xlu0 %762
    %764 = vadd.xlane.f32.xlu0 %v737
    %v765 = vpop.xlane.xlu0 %764
    %766 = vadd.xlane.f32.xlu0 %v738
    %v767 = vpop.xlane.xlu0 %766
    %768 = vadd.xlane.f32.xlu0 %v739
    %v769 = vpop.xlane.xlu0 %768
    %770 = vadd.xlane.f32.xlu0 %v740
    %v771 = vpop.xlane.xlu0 %770
    %772 = vadd.xlane.f32.xlu0 %v741
    %v773 = vpop.xlane.xlu0 %772
    %s774 = sld [smem:[#allocation2]]
    %v775 = vstv %s774
    %v776 = vadd.f32 %v743, %v775
    %v777 = vadd.f32 %v745, %v775
    %v778 = vadd.f32 %v747, %v775
    %v779 = vadd.f32 %v749, %v775
    %v780 = vadd.f32 %v751, %v775
    %v781 = vadd.f32 %v753, %v775
    %v782 = vadd.f32 %v755, %v775
    %v783 = vadd.f32 %v757, %v775
    %v784 = vadd.f32 %v759, %v775
    %v785 = vadd.f32 %v761, %v775
    %v786 = vadd.f32 %v763, %v775
    %v787 = vadd.f32 %v765, %v775
    %v788 = vadd.f32 %v767, %v775
    %v789 = vadd.f32 %v769, %v775
    %v790 = vadd.f32 %v771, %v775
    %v791 = vadd.f32 %v773, %v775
    %v808 = vlaneseq
    %v809 = vand.u32 %v808, 127
    %v810 = vlaneseq
    %v811 = vshrl.u32 %v810, 7
    %v812 = vsub.s32 %v809, %v811
    %v813 = vrot.slane %v776, %v812
    %v814 = vadd.s32 %v809, 4294967288
    %v815 = vlaneseq
    %v816 = vshrl.u32 %v815, 7
    %v817 = vsub.s32 %v814, %v816
    %v818 = vrot.slane %v777, %v817
    %vm819 = vcmask 130112
    %v820 = vsel %vm819, %v818, %v813
    %v821 = vadd.s32 %v809, 4294967280
    %v822 = vlaneseq
    %v823 = vshrl.u32 %v822, 7
    %v824 = vsub.s32 %v821, %v823
    %v825 = vrot.slane %v778, %v824
    %vm826 = vcmask 195712
    %v827 = vsel %vm826, %v825, %v820
    %v828 = vadd.s32 %v809, 4294967272
    %v829 = vlaneseq
    %v830 = vshrl.u32 %v829, 7
    %v831 = vsub.s32 %v828, %v830
    %v832 = vrot.slane %v779, %v831
    %vm833 = vcmask 261312
    %v834 = vsel %vm833, %v832, %v827
    %v835 = vadd.s32 %v809, 4294967264
    %v836 = vlaneseq
    %v837 = vshrl.u32 %v836, 7
    %v838 = vsub.s32 %v835, %v837
    %v839 = vrot.slane %v780, %v838
    %vm840 = vcmask 326912
    %v841 = vsel %vm840, %v839, %v834
    %v842 = vadd.s32 %v809, 4294967256
    %v843 = vlaneseq
    %v844 = vshrl.u32 %v843, 7
    %v845 = vsub.s32 %v842, %v844
    %v846 = vrot.slane %v781, %v845
    %vm847 = vcmask 392512
    %v848 = vsel %vm847, %v846, %v841
    %v849 = vadd.s32 %v809, 4294967248
    %v850 = vlaneseq
    %v851 = vshrl.u32 %v850, 7
    %v852 = vsub.s32 %v849, %v851
    %v853 = vrot.slane %v782, %v852
    %vm854 = vcmask 458112
    %v855 = vsel %vm854, %v853, %v848
    %v856 = vadd.s32 %v809, 4294967240
    %v857 = vlaneseq
    %v858 = vshrl.u32 %v857, 7
    %v859 = vsub.s32 %v856, %v858
    %v860 = vrot.slane %v783, %v859
    %vm861 = vcmask 523712
    %v862 = vsel %vm861, %v860, %v855
    %v863 = vadd.s32 %v809, 4294967232
    %v864 = vlaneseq
    %v865 = vshrl.u32 %v864, 7
    %v866 = vsub.s32 %v863, %v865
    %v867 = vrot.slane %v784, %v866
    %vm868 = vcmask 589312
    %v869 = vsel %vm868, %v867, %v862
    %v870 = vadd.s32 %v809, 4294967224
    %v871 = vlaneseq
    %v872 = vshrl.u32 %v871, 7
    %v873 = vsub.s32 %v870, %v872
    %v874 = vrot.slane %v785, %v873
    %vm875 = vcmask 654912
    %v876 = vsel %vm875, %v874, %v869
    %v877 = vadd.s32 %v809, 4294967216
    %v878 = vlaneseq
    %v879 = vshrl.u32 %v878, 7
    %v880 = vsub.s32 %v877, %v879
    %v881 = vrot.slane %v786, %v880
    %vm882 = vcmask 720512
    %v883 = vsel %vm882, %v881, %v876
    %v884 = vadd.s32 %v809, 4294967208
    %v885 = vlaneseq
    %v886 = vshrl.u32 %v885, 7
    %v887 = vsub.s32 %v884, %v886
    %v888 = vrot.slane %v787, %v887
    %vm889 = vcmask 786112
    %v890 = vsel %vm889, %v888, %v883
    %v891 = vadd.s32 %v809, 4294967200
    %v892 = vlaneseq
    %v893 = vshrl.u32 %v892, 7
    %v894 = vsub.s32 %v891, %v893
    %v895 = vrot.slane %v788, %v894
    %vm896 = vcmask 851712
    %v897 = vsel %vm896, %v895, %v890
    %v898 = vadd.s32 %v809, 4294967192
    %v899 = vlaneseq
    %v900 = vshrl.u32 %v899, 7
    %v901 = vsub.s32 %v898, %v900
    %v902 = vrot.slane %v789, %v901
    %vm903 = vcmask 917312
    %v904 = vsel %vm903, %v902, %v897
    %v905 = vadd.s32 %v809, 4294967184
    %v906 = vlaneseq
    %v907 = vshrl.u32 %v906, 7
    %v908 = vsub.s32 %v905, %v907
    %v909 = vrot.slane %v790, %v908
    %vm910 = vcmask 982912
    %v911 = vsel %vm910, %v909, %v904
    %v912 = vadd.s32 %v809, 4294967176
    %v913 = vlaneseq
    %v914 = vshrl.u32 %v913, 7
    %v915 = vsub.s32 %v912, %v914
    %v916 = vrot.slane %v791, %v915
    %vm917 = vcmask 1048512
    %v918 = vsel %vm917, %v916, %v911
    %920 = vst [vmem:[#allocation8] sm:$0x1] %v918
    // Predicated region
    $region26: #{tpu_custom_call.1} parent=1 // pred_check
      _
    $region27: #{tpu_custom_call.1} parent=1 // pred_check_branch
      %922 = sbr.rel (0) target = $region29
    $region28: #{tpu_custom_call.1} parent=1 // pred_region
      %s924 = ssub.s32 16, 16
      %925 = vsyncadd [#allocation5], %s924
      %s927 = sshll.u32 [#allocation8], 4
      %s928 = int_to_ptr.vmem [resolvable:$true] %s927
      %930 = dma.vmem_to_hbm [thread:$0]  %s928, 16, %s4, [#allocation5]
    $region29: #{tpu_custom_call.1} parent=1 // pred_fallthru
      _
    // Predicated region
    $region30: #{tpu_custom_call.1} parent=1 // pred_check
      _
    $region31: #{tpu_custom_call.1} parent=1 // pred_check_branch
      %932 = sbr.rel (0) target = $region33
    $region32: #{tpu_custom_call.1} parent=1 // pred_region
      %933 = dma.done [#allocation5], 16
    $region33: #{tpu_custom_call.1} parent=1 // pred_fallthru
      _
    %934 = vsyncpa [#allocation4], 1
    %935 = vsyncpa [#allocation7], 1
    %936 = vsyncpa [#allocation5], 1

</llo_original>
